<compile_context>
chip_gen: v7x
topology: tpu7x:2x2x1
jax: 0.10.0
libtpu: 0.0.40
codegen_flags: <defaults>
</compile_context>

<pallas_src>
import jax
import jax.numpy as jnp
from jax.experimental import pallas as pl
from jax.experimental.pallas import tpu as pltpu

HIDDEN = 256


def _round_up(x, m):
    return ((x + m - 1) // m) * m


def _cdiv(a, b):
    return (a + b - 1) // b


def critic_kernel(state_ref, action_ref,
                  was_ref, waa_ref, ba_ref,
                  wb1_ref, bb1_ref, wb2_ref, bb2_ref,
                  wc1_ref, bc1_ref, wc2_ref, bc2_ref,
                  q1_ref, q2_ref):
    # Layer 1 | Layer 4 fused:  h = [state|action] @ [W1|W4] + [b1|b4]
    s = state_ref[...].astype(jnp.bfloat16)
    a = action_ref[...].astype(jnp.bfloat16)
    h = (jnp.dot(s, was_ref[...], preferred_element_type=jnp.float32)
         + jnp.dot(a, waa_ref[...], preferred_element_type=jnp.float32)
         + ba_ref[...])
    h = jnp.maximum(h, 0.0)                              # (tb, 512) f32

    # Layer 2 / Layer 5 as two independent 256x256 matmuls (no zero blocks).
    h1 = h[:, :HIDDEN].astype(jnp.bfloat16)
    h2 = h[:, HIDDEN:].astype(jnp.bfloat16)
    g1 = jnp.maximum(
        jnp.dot(h1, wb1_ref[...], preferred_element_type=jnp.float32)
        + bb1_ref[...], 0.0)                             # (tb, 256) f32
    g2 = jnp.maximum(
        jnp.dot(h2, wb2_ref[...], preferred_element_type=jnp.float32)
        + bb2_ref[...], 0.0)                             # (tb, 256) f32

    # Layer 3 / Layer 6 heads in f32 (tiny, keeps TD-target precision).
    q1_ref[...] = (jnp.dot(g1, wc1_ref[...], preferred_element_type=jnp.float32)
                   + bc1_ref[...]).astype(q1_ref.dtype)
    q2_ref[...] = (jnp.dot(g2, wc2_ref[...], preferred_element_type=jnp.float32)
                   + bc2_ref[...]).astype(q2_ref.dtype)


def critic_forward(state, action, fused, *, max_tile_b=1024):
    """state: (B, state_dim) f32, action: (B, action_dim) f32.
    fused: dict from fuse_critic_params(). Returns (q1, q2), each (B, 1) f32."""
    B, state_dim = state.shape
    action_dim = action.shape[1]
    H = HIDDEN

    # Batch tiling. When B >= 16 force at least 2 grid steps so v7x can shard
    # the batch across both TensorCores; otherwise use a single tile (no pad
    # needed for B already a multiple of 8).
    b_pad = _round_up(B, 8)
    if b_pad >= 16:
        tile_b = min(max_tile_b, _round_up(_cdiv(b_pad, 2), 8))
    else:
        tile_b = b_pad
    b_pad = _round_up(b_pad, tile_b)

    if b_pad != B:
        state = jnp.pad(state, ((0, b_pad - B), (0, 0)))
        action = jnp.pad(action, ((0, b_pad - B), (0, 0)))

    grid = (b_pad // tile_b,)
    const = lambda i: (0, 0)   # weights / biases: VMEM-resident across grid steps

    q1, q2 = pl.pallas_call(
        critic_kernel,
        out_shape=(jax.ShapeDtypeStruct((b_pad, 1), jnp.float32),
                   jax.ShapeDtypeStruct((b_pad, 1), jnp.float32)),
        grid=grid,
        in_specs=[
            pl.BlockSpec((tile_b, state_dim), lambda i: (i, 0)),   # state tile
            pl.BlockSpec((tile_b, action_dim), lambda i: (i, 0)),  # action tile
            pl.BlockSpec((state_dim, 2 * H), const),               # Wa_state  bf16
            pl.BlockSpec((action_dim, 2 * H), const),              # Wa_action bf16
            pl.BlockSpec((1, 2 * H), const),                       # ba        f32
            pl.BlockSpec((H, H), const),                           # W2        bf16
            pl.BlockSpec((1, H), const),                           # b2        f32
            pl.BlockSpec((H, H), const),                           # W5        bf16
            pl.BlockSpec((1, H), const),                           # b5        f32
            pl.BlockSpec((H, 1), const),                           # W3        f32
            pl.BlockSpec((1, 1), const),                           # b3        f32
            pl.BlockSpec((H, 1), const),                           # W6        f32
            pl.BlockSpec((1, 1), const),                           # b6        f32
        ],
        out_specs=(pl.BlockSpec((tile_b, 1), lambda i: (i, 0)),
                   pl.BlockSpec((tile_b, 1), lambda i: (i, 0))),
        compiler_params=pltpu.CompilerParams(
            dimension_semantics=("parallel",),          # shard batch over TCs
            vmem_limit_bytes=32 * 1024 * 1024),         # headroom for big tiles
    )(state, action,
      fused["wa_s"], fused["wa_a"], fused["ba"],
      fused["wb1"], fused["bb1"], fused["wb2"], fused["bb2"],
      fused["wc1"], fused["bc1"], fused["wc2"], fused["bc2"])

    if b_pad != B:
        q1 = q1[:B]
        q2 = q2[:B]
    return q1, q2


def fuse_critic_params(params, state_dim):
    """Pack the six nn.Linear layers into the fused twin-Q layout (done once)."""
    # Layer 1 | Layer 4 (same input): concat outputs, then split the input rows
    # into the state part and the action part (kernel fuses the concat).
    wa = jnp.concatenate([params["w1"], params["w4"]], axis=1)       # (D, 512)
    ba = jnp.concatenate([params["b1"], params["b4"]], axis=1)       # (1, 512)
    return {
        "wa_s": wa[:state_dim].astype(jnp.bfloat16),                 # (S, 512)
        "wa_a": wa[state_dim:].astype(jnp.bfloat16),                 # (A, 512)
        "ba": ba,
        "wb1": params["w2"].astype(jnp.bfloat16), "bb1": params["b2"],
        "wb2": params["w5"].astype(jnp.bfloat16), "bb2": params["b5"],
        # tiny final heads kept in f32 for Q-value precision
        "wc1": params["w3"], "bc1": params["b3"],
        "wc2": params["w6"], "bc2": params["b6"],
    }


def init_critic_params(key, state_dim, action_dim, hidden=HIDDEN):
    """Synthetic init mimicking nn.Linear's U(-1/sqrt(fan_in), 1/sqrt(fan_in))."""
    def linear(k, fan_in, fan_out):
        kw, kb = jax.random.split(k)
        bound = 1.0 / jnp.sqrt(jnp.float32(fan_in))
        w = jax.random.uniform(kw, (fan_in, fan_out), jnp.float32, -bound, bound)
        b = jax.random.uniform(kb, (1, fan_out), jnp.float32, -bound, bound)
        return w, b

    ks = jax.random.split(key, 6)
    sa_dim = state_dim + action_dim
    w1, b1 = linear(ks[0], sa_dim, hidden)
    w2, b2 = linear(ks[1], hidden, hidden)
    w3, b3 = linear(ks[2], hidden, 1)
    w4, b4 = linear(ks[3], sa_dim, hidden)
    w5, b5 = linear(ks[4], hidden, hidden)
    w6, b6 = linear(ks[5], hidden, 1)
    return {"w1": w1, "b1": b1, "w2": w2, "b2": b2, "w3": w3, "b3": b3,
            "w4": w4, "b4": b4, "w5": w5, "b5": b5, "w6": w6, "b6": b6}


def critic_forward_ref(state, action, params):
    """Pure-JAX f32 reference (exact module semantics)."""
    sa = jnp.concatenate([state, action], axis=1)
    q1 = jnp.maximum(sa @ params["w1"] + params["b1"], 0.0)
    q1 = jnp.maximum(q1 @ params["w2"] + params["b2"], 0.0)
    q1 = q1 @ params["w3"] + params["b3"]
    q2 = jnp.maximum(sa @ params["w4"] + params["b4"], 0.0)
    q2 = jnp.maximum(q2 @ params["w5"] + params["b5"], 0.0)
    q2 = q2 @ params["w6"] + params["b6"]
    return q1, q2


if __name__ == "__main__":
    # Robot-nav critic shapes: state_dim=24, action_dim=2, small batch.
    B, STATE_DIM, ACTION_DIM = 8, 24, 2

    key = jax.random.PRNGKey(0)
    k_state, k_action, k_params = jax.random.split(key, 3)

    state = jax.random.normal(k_state, (B, STATE_DIM), jnp.float32)
    action = jnp.tanh(jax.random.normal(k_action, (B, ACTION_DIM), jnp.float32))
    params = init_critic_params(k_params, STATE_DIM, ACTION_DIM)
    fused = fuse_critic_params(params, STATE_DIM)   # one-time weight packing

    q1, q2 = jax.jit(critic_forward)(state, action, fused)
    jax.block_until_ready((q1, q2))

    q1_ref, q2_ref = critic_forward_ref(state, action, params)
    # bf16 MXU operands in layers 1/2/4/5 => loose tolerance vs f32 reference.
    assert q1.shape == (B, 1) and q2.shape == (B, 1)
    assert jnp.allclose(q1, q1_ref, atol=5e-2, rtol=5e-2)
    assert jnp.allclose(q2, q2_ref, atol=5e-2, rtol=5e-2)

    print("KERNEL_OK")
</pallas_src>

<mosaic_0001>
module attributes {stable_mosaic.version = 11 : i64} {
  func.func @critic_kernel(%arg0: i32, %arg1: memref<8x24xf32, #tpu.memory_space<vmem>>, %arg2: memref<8x2xf32, #tpu.memory_space<vmem>>, %arg3: memref<24x512xbf16, #tpu.memory_space<vmem>>, %arg4: memref<2x512xbf16, #tpu.memory_space<vmem>>, %arg5: memref<1x512xf32, #tpu.memory_space<vmem>>, %arg6: memref<256x256xbf16, #tpu.memory_space<vmem>>, %arg7: memref<1x256xf32, #tpu.memory_space<vmem>>, %arg8: memref<256x256xbf16, #tpu.memory_space<vmem>>, %arg9: memref<1x256xf32, #tpu.memory_space<vmem>>, %arg10: memref<256x1xf32, #tpu.memory_space<vmem>>, %arg11: memref<1x1xf32, #tpu.memory_space<vmem>>, %arg12: memref<256x1xf32, #tpu.memory_space<vmem>>, %arg13: memref<1x1xf32, #tpu.memory_space<vmem>>, %arg14: memref<8x1xf32, #tpu.memory_space<vmem>>, %arg15: memref<8x1xf32, #tpu.memory_space<vmem>>) attributes {dimension_semantics = [#tpu.dimension_semantics<parallel>], iteration_bounds = array<i64: 1>, scalar_prefetch = 0 : i64, scratch_operands = 0 : i64, tpu.core_type = #tpu.core_type<tc>, window_params = [{transform_indices = @transform_0, window_bounds = array<i64: 8, 24>}, {transform_indices = @transform_1, window_bounds = array<i64: 8, 2>}, {pipeline_mode = #tpu.pipeline_mode<synchronous>, transform_indices = @transform_2, window_bounds = array<i64: 24, 512>}, {pipeline_mode = #tpu.pipeline_mode<synchronous>, transform_indices = @transform_3, window_bounds = array<i64: 2, 512>}, {pipeline_mode = #tpu.pipeline_mode<synchronous>, transform_indices = @transform_4, window_bounds = array<i64: 1, 512>}, {pipeline_mode = #tpu.pipeline_mode<synchronous>, transform_indices = @transform_5, window_bounds = array<i64: 256, 256>}, {pipeline_mode = #tpu.pipeline_mode<synchronous>, transform_indices = @transform_6, window_bounds = array<i64: 1, 256>}, {pipeline_mode = #tpu.pipeline_mode<synchronous>, transform_indices = @transform_7, window_bounds = array<i64: 256, 256>}, {pipeline_mode = #tpu.pipeline_mode<synchronous>, transform_indices = @transform_8, window_bounds = array<i64: 1, 256>}, {pipeline_mode = #tpu.pipeline_mode<synchronous>, transform_indices = @transform_9, window_bounds = array<i64: 256, 1>}, {pipeline_mode = #tpu.pipeline_mode<synchronous>, transform_indices = @transform_10, window_bounds = array<i64: 1, 1>}, {pipeline_mode = #tpu.pipeline_mode<synchronous>, transform_indices = @transform_11, window_bounds = array<i64: 256, 1>}, {pipeline_mode = #tpu.pipeline_mode<synchronous>, transform_indices = @transform_12, window_bounds = array<i64: 1, 1>}, {transform_indices = @transform_13, window_bounds = array<i64: 8, 1>}, {transform_indices = @transform_14, window_bounds = array<i64: 8, 1>}]} {
    %c0 = arith.constant 0 : index
    %c0_0 = arith.constant 0 : index
    %0 = vector.load %arg1[%c0, %c0_0] : memref<8x24xf32, #tpu.memory_space<vmem>>, vector<8x24xf32>
    %1 = arith.truncf %0 : vector<8x24xf32> to vector<8x24xbf16>
    %c0_1 = arith.constant 0 : index
    %c0_2 = arith.constant 0 : index
    %2 = vector.load %arg2[%c0_1, %c0_2] : memref<8x2xf32, #tpu.memory_space<vmem>>, vector<8x2xf32>
    %3 = arith.truncf %2 : vector<8x2xf32> to vector<8x2xbf16>
    %c0_3 = arith.constant 0 : index
    %c0_4 = arith.constant 0 : index
    %4 = vector.load %arg3[%c0_3, %c0_4] : memref<24x512xbf16, #tpu.memory_space<vmem>>, vector<24x512xbf16>
    %cst = arith.constant dense<0.000000e+00> : vector<8x512xf32>
    %5 = tpu.matmul %1, %4, %cst {dimension_numbers = #tpu.dot_dimension_numbers<[1], [0], [0], [1], [0, 0, 1, 1], [], []>} : vector<8x24xbf16>, vector<24x512xbf16>, vector<8x512xf32> -> vector<8x512xf32>
    %c0_5 = arith.constant 0 : index
    %c0_6 = arith.constant 0 : index
    %6 = vector.load %arg4[%c0_5, %c0_6] : memref<2x512xbf16, #tpu.memory_space<vmem>>, vector<2x512xbf16>
    %cst_7 = arith.constant dense<0.000000e+00> : vector<8x512xf32>
    %7 = tpu.matmul %3, %6, %cst_7 {dimension_numbers = #tpu.dot_dimension_numbers<[1], [0], [0], [1], [0, 0, 1, 1], [], []>} : vector<8x2xbf16>, vector<2x512xbf16>, vector<8x512xf32> -> vector<8x512xf32>
    %8 = arith.addf %5, %7 : vector<8x512xf32>
    %c0_8 = arith.constant 0 : index
    %c0_9 = arith.constant 0 : index
    %9 = vector.load %arg5[%c0_8, %c0_9] : memref<1x512xf32, #tpu.memory_space<vmem>>, vector<1x512xf32>
    %10 = vector.broadcast %9 : vector<1x512xf32> to vector<8x512xf32>
    %11 = arith.addf %8, %10 : vector<8x512xf32>
    %cst_10 = arith.constant 0.000000e+00 : f32
    %12 = vector.broadcast %cst_10 : f32 to vector<8x512xf32>
    %13 = arith.maximumf %11, %12 : vector<8x512xf32>
    %14 = vector.extract_strided_slice %13 {offsets = [0, 0], sizes = [8, 256], strides = [1, 1]} : vector<8x512xf32> to vector<8x256xf32>
    %15 = arith.truncf %14 : vector<8x256xf32> to vector<8x256xbf16>
    %16 = vector.extract_strided_slice %13 {offsets = [0, 256], sizes = [8, 256], strides = [1, 1]} : vector<8x512xf32> to vector<8x256xf32>
    %17 = arith.truncf %16 : vector<8x256xf32> to vector<8x256xbf16>
    %c0_11 = arith.constant 0 : index
    %c0_12 = arith.constant 0 : index
    %18 = vector.load %arg6[%c0_11, %c0_12] : memref<256x256xbf16, #tpu.memory_space<vmem>>, vector<256x256xbf16>
    %cst_13 = arith.constant dense<0.000000e+00> : vector<8x256xf32>
    %19 = tpu.matmul %15, %18, %cst_13 {dimension_numbers = #tpu.dot_dimension_numbers<[1], [0], [0], [1], [0, 0, 1, 1], [], []>} : vector<8x256xbf16>, vector<256x256xbf16>, vector<8x256xf32> -> vector<8x256xf32>
    %c0_14 = arith.constant 0 : index
    %c0_15 = arith.constant 0 : index
    %20 = vector.load %arg7[%c0_14, %c0_15] : memref<1x256xf32, #tpu.memory_space<vmem>>, vector<1x256xf32>
    %21 = vector.broadcast %20 : vector<1x256xf32> to vector<8x256xf32>
    %22 = arith.addf %19, %21 : vector<8x256xf32>
    %cst_16 = arith.constant 0.000000e+00 : f32
    %23 = vector.broadcast %cst_16 : f32 to vector<8x256xf32>
    %24 = arith.maximumf %22, %23 : vector<8x256xf32>
    %c0_17 = arith.constant 0 : index
    %c0_18 = arith.constant 0 : index
    %25 = vector.load %arg8[%c0_17, %c0_18] : memref<256x256xbf16, #tpu.memory_space<vmem>>, vector<256x256xbf16>
    %cst_19 = arith.constant dense<0.000000e+00> : vector<8x256xf32>
    %26 = tpu.matmul %17, %25, %cst_19 {dimension_numbers = #tpu.dot_dimension_numbers<[1], [0], [0], [1], [0, 0, 1, 1], [], []>} : vector<8x256xbf16>, vector<256x256xbf16>, vector<8x256xf32> -> vector<8x256xf32>
    %c0_20 = arith.constant 0 : index
    %c0_21 = arith.constant 0 : index
    %27 = vector.load %arg9[%c0_20, %c0_21] : memref<1x256xf32, #tpu.memory_space<vmem>>, vector<1x256xf32>
    %28 = vector.broadcast %27 : vector<1x256xf32> to vector<8x256xf32>
    %29 = arith.addf %26, %28 : vector<8x256xf32>
    %cst_22 = arith.constant 0.000000e+00 : f32
    %30 = vector.broadcast %cst_22 : f32 to vector<8x256xf32>
    %31 = arith.maximumf %29, %30 : vector<8x256xf32>
    %c0_23 = arith.constant 0 : index
    %c0_24 = arith.constant 0 : index
    %32 = vector.load %arg10[%c0_23, %c0_24] : memref<256x1xf32, #tpu.memory_space<vmem>>, vector<256x1xf32>
    %cst_25 = arith.constant dense<0.000000e+00> : vector<8x1xf32>
    %33 = tpu.matmul %24, %32, %cst_25 {dimension_numbers = #tpu.dot_dimension_numbers<[1], [0], [0], [1], [0, 0, 1, 1], [], []>} : vector<8x256xf32>, vector<256x1xf32>, vector<8x1xf32> -> vector<8x1xf32>
    %c0_26 = arith.constant 0 : index
    %c0_27 = arith.constant 0 : index
    %34 = vector.load %arg11[%c0_26, %c0_27] : memref<1x1xf32, #tpu.memory_space<vmem>>, vector<1x1xf32>
    %35 = vector.broadcast %34 : vector<1x1xf32> to vector<8x1xf32>
    %36 = arith.addf %33, %35 : vector<8x1xf32>
    %c0_28 = arith.constant 0 : index
    %c0_29 = arith.constant 0 : index
    %37 = vector.load %arg14[%c0_28, %c0_29] : memref<8x1xf32, #tpu.memory_space<vmem>>, vector<8x1xf32>
    tpu.vector_store %arg14[%c0_28, %c0_29], %36 {strides = array<i32>} : memref<8x1xf32, #tpu.memory_space<vmem>>, vector<8x1xf32>,
    %c0_30 = arith.constant 0 : index
    %c0_31 = arith.constant 0 : index
    %38 = vector.load %arg12[%c0_30, %c0_31] : memref<256x1xf32, #tpu.memory_space<vmem>>, vector<256x1xf32>
    %cst_32 = arith.constant dense<0.000000e+00> : vector<8x1xf32>
    %39 = tpu.matmul %31, %38, %cst_32 {dimension_numbers = #tpu.dot_dimension_numbers<[1], [0], [0], [1], [0, 0, 1, 1], [], []>} : vector<8x256xf32>, vector<256x1xf32>, vector<8x1xf32> -> vector<8x1xf32>
    %c0_33 = arith.constant 0 : index
    %c0_34 = arith.constant 0 : index
    %40 = vector.load %arg13[%c0_33, %c0_34] : memref<1x1xf32, #tpu.memory_space<vmem>>, vector<1x1xf32>
    %41 = vector.broadcast %40 : vector<1x1xf32> to vector<8x1xf32>
    %42 = arith.addf %39, %41 : vector<8x1xf32>
    %c0_35 = arith.constant 0 : index
    %c0_36 = arith.constant 0 : index
    %43 = vector.load %arg15[%c0_35, %c0_36] : memref<8x1xf32, #tpu.memory_space<vmem>>, vector<8x1xf32>
    tpu.vector_store %arg15[%c0_35, %c0_36], %42 {strides = array<i32>} : memref<8x1xf32, #tpu.memory_space<vmem>>, vector<8x1xf32>,
    return
  }
  func.func @transform_0(%arg0: i32) -> (i32, i32) {
    %c0_i32 = arith.constant 0 : i32
    %c0_i32_0 = arith.constant 0 : i32
    return %arg0, %c0_i32 : i32, i32
  }
  func.func @transform_1(%arg0: i32) -> (i32, i32) {
    %c0_i32 = arith.constant 0 : i32
    %c0_i32_0 = arith.constant 0 : i32
    return %arg0, %c0_i32 : i32, i32
  }
  func.func @transform_2(%arg0: i32) -> (i32, i32) {
    %c0_i32 = arith.constant 0 : i32
    %c0_i32_0 = arith.constant 0 : i32
    %c0_i32_1 = arith.constant 0 : i32
    return %c0_i32, %c0_i32_0 : i32, i32
  }
  func.func @transform_3(%arg0: i32) -> (i32, i32) {
    %c0_i32 = arith.constant 0 : i32
    %c0_i32_0 = arith.constant 0 : i32
    %c0_i32_1 = arith.constant 0 : i32
    return %c0_i32, %c0_i32_0 : i32, i32
  }
  func.func @transform_4(%arg0: i32) -> (i32, i32) {
    %c0_i32 = arith.constant 0 : i32
    %c0_i32_0 = arith.constant 0 : i32
    %c0_i32_1 = arith.constant 0 : i32
    return %c0_i32, %c0_i32_0 : i32, i32
  }
  func.func @transform_5(%arg0: i32) -> (i32, i32) {
    %c0_i32 = arith.constant 0 : i32
    %c0_i32_0 = arith.constant 0 : i32
    %c0_i32_1 = arith.constant 0 : i32
    return %c0_i32, %c0_i32_0 : i32, i32
  }
  func.func @transform_6(%arg0: i32) -> (i32, i32) {
    %c0_i32 = arith.constant 0 : i32
    %c0_i32_0 = arith.constant 0 : i32
    %c0_i32_1 = arith.constant 0 : i32
    return %c0_i32, %c0_i32_0 : i32, i32
  }
  func.func @transform_7(%arg0: i32) -> (i32, i32) {
    %c0_i32 = arith.constant 0 : i32
    %c0_i32_0 = arith.constant 0 : i32
    %c0_i32_1 = arith.constant 0 : i32
    return %c0_i32, %c0_i32_0 : i32, i32
  }
  func.func @transform_8(%arg0: i32) -> (i32, i32) {
    %c0_i32 = arith.constant 0 : i32
    %c0_i32_0 = arith.constant 0 : i32
    %c0_i32_1 = arith.constant 0 : i32
    return %c0_i32, %c0_i32_0 : i32, i32
  }
  func.func @transform_9(%arg0: i32) -> (i32, i32) {
    %c0_i32 = arith.constant 0 : i32
    %c0_i32_0 = arith.constant 0 : i32
    %c0_i32_1 = arith.constant 0 : i32
    return %c0_i32, %c0_i32_0 : i32, i32
  }
  func.func @transform_10(%arg0: i32) -> (i32, i32) {
    %c0_i32 = arith.constant 0 : i32
    %c0_i32_0 = arith.constant 0 : i32
    %c0_i32_1 = arith.constant 0 : i32
    return %c0_i32, %c0_i32_0 : i32, i32
  }
  func.func @transform_11(%arg0: i32) -> (i32, i32) {
    %c0_i32 = arith.constant 0 : i32
    %c0_i32_0 = arith.constant 0 : i32
    %c0_i32_1 = arith.constant 0 : i32
    return %c0_i32, %c0_i32_0 : i32, i32
  }
  func.func @transform_12(%arg0: i32) -> (i32, i32) {
    %c0_i32 = arith.constant 0 : i32
    %c0_i32_0 = arith.constant 0 : i32
    %c0_i32_1 = arith.constant 0 : i32
    return %c0_i32, %c0_i32_0 : i32, i32
  }
  func.func @transform_13(%arg0: i32) -> (i32, i32) {
    %c0_i32 = arith.constant 0 : i32
    %c0_i32_0 = arith.constant 0 : i32
    return %arg0, %c0_i32 : i32, i32
  }
  func.func @transform_14(%arg0: i32) -> (i32, i32) {
    %c0_i32 = arith.constant 0 : i32
    %c0_i32_0 = arith.constant 0 : i32
    return %arg0, %c0_i32 : i32, i32
  }
}

</mosaic_0001>

<llo_original>
// kernel: critic_forward.1
$region0: #{critic_forward.1}
  #allocation0 [shape = 'u32[]', space=smem, size = 0x4, offset = 0x4, fixed_abs, tag = 'smem constant byte address 0x4 - core index']
  #allocation1 [shape = 'u32[144,128]{1,0:T(1,128)}', space=vmem, size = 0x12000, scoped, tag = 'internal scratch']
  #allocation2 [shape = 'f32[1,1]{1,0:T(1,128)S(1)}', space=vmem, size = 0x200, scoped, tag = 'scoped memory for critic_forward.1']
  #allocation3 [shape = 'f32[1,1]{1,0:T(1,128)S(1)}', space=vmem, size = 0x200, scoped, tag = 'scoped memory for critic_forward.1']
  %s0 = inlined_call_operand.vmem [shape: f32[8,24], index: 0, kind: input, shape index: {}]
  %s1 = inlined_call_operand.vmem [shape: f32[8,2], index: 1, kind: input, shape index: {}]
  %s2 = inlined_call_operand.hbm [shape: bf16[24,512], index: 2, kind: input, shape index: {}]
  %s3 = inlined_call_operand.vmem [shape: bf16[2,512], index: 3, kind: input, shape index: {}]
  %s4 = inlined_call_operand.vmem [shape: f32[1,512], index: 4, kind: input, shape index: {}]
  %s5 = inlined_call_operand.vmem [shape: bf16[256,256], index: 5, kind: input, shape index: {}]
  %s6 = inlined_call_operand.vmem [shape: f32[1,256], index: 6, kind: input, shape index: {}]
  %s7 = inlined_call_operand.vmem [shape: bf16[256,256], index: 7, kind: input, shape index: {}]
  %s8 = inlined_call_operand.vmem [shape: f32[1,256], index: 8, kind: input, shape index: {}]
  %s9 = inlined_call_operand.vmem [shape: f32[256,1], index: 9, kind: input, shape index: {}]
  %s10 = inlined_call_operand.<no memory space> [shape: f32[1,1], index: 10, kind: input, shape index: {}]
  %s11 = inlined_call_operand.vmem [shape: f32[256,1], index: 11, kind: input, shape index: {}]
  %s12 = inlined_call_operand.<no memory space> [shape: f32[1,1], index: 12, kind: input, shape index: {}]
  %s13 = inlined_call_operand.vmem [shape: f32[8,1], index: 13, kind: output, shape index: {0}]
  %s14 = inlined_call_operand.vmem [shape: f32[8,1], index: 14, kind: output, shape index: {1}]
  %15 = xla_tuple %s13, %s14
  %s16 = sld [smem:[#allocation0]]
  $region74: #{critic_forward.1} parent=0
    _
  %s18 = ssub.s32 1, %s16
  %s19 = scalar_select 0, %s18, %s16
  %v20 = vstv %s10
  %21 = vst [vmem:[#allocation2] sm:$0x1] %v20
  %v22 = vstv %s12
  %23 = vst [vmem:[#allocation3] sm:$0x1] %v22
  $region1: #{critic_forward.1} parent=0
    #allocation4 [shape = 'u8[24576]{0}', space=vmem, size = 0x6000, scoped, tag = 'input window, operand 2, single buffered']
    #allocation5 [shape = 's32[1]{0}', space=sflag, size = 0x4, scoped, tag = 'scoped memory for critic_forward.1']
    %24 = vsyncpa [#allocation5], 0
    // Predicated region
    $region2: #{critic_forward.1} parent=1 // pred_check
      _
    $region3: #{critic_forward.1} parent=1 // pred_check_branch
      %26 = sbr.rel (0) target = $region5
    $region4: #{critic_forward.1} parent=1 // pred_region
      _
    $region5: #{critic_forward.1} parent=1 // pred_fallthru
      _
    // Predicated region
    $region6: #{critic_forward.1} parent=1 // pred_check
      _
    $region7: #{critic_forward.1} parent=1 // pred_check_branch
      %28 = sbr.rel (0) target = $region9
    $region8: #{critic_forward.1} parent=1 // pred_region
      _
    $region9: #{critic_forward.1} parent=1 // pred_fallthru
      _
    // Predicated region
    $region10: #{critic_forward.1} parent=1 // pred_check
      _
    $region11: #{critic_forward.1} parent=1 // pred_check_branch
      %30 = sbr.rel (0) target = $region13
    $region12: #{critic_forward.1} parent=1 // pred_region
      %s32 = ssub.s32 768, 768
      %33 = vsyncadd [#allocation5], %s32
      %s34 = sshll.u32 [#allocation4], 4
      %s35 = int_to_ptr.vmem [resolvable:$true] %s34
      %40 = dma.hbm_to_vmem [thread:$0]  %s2, 768, %s35, [#allocation5], 256, 256, 16
    $region13: #{critic_forward.1} parent=1 // pred_fallthru
      _
    // Predicated region
    $region14: #{critic_forward.1} parent=1 // pred_check
      _
    $region15: #{critic_forward.1} parent=1 // pred_check_branch
      %42 = sbr.rel (0) target = $region17
    $region16: #{critic_forward.1} parent=1 // pred_region
      _
    $region17: #{critic_forward.1} parent=1 // pred_fallthru
      _
    // Predicated region
    $region18: #{critic_forward.1} parent=1 // pred_check
      _
    $region19: #{critic_forward.1} parent=1 // pred_check_branch
      %44 = sbr.rel (0) target = $region21
    $region20: #{critic_forward.1} parent=1 // pred_region
      _
    $region21: #{critic_forward.1} parent=1 // pred_fallthru
      _
    // Predicated region
    $region22: #{critic_forward.1} parent=1 // pred_check
      _
    $region23: #{critic_forward.1} parent=1 // pred_check_branch
      %46 = sbr.rel (0) target = $region25
    $region24: #{critic_forward.1} parent=1 // pred_region
      _
    $region25: #{critic_forward.1} parent=1 // pred_fallthru
      _
    // Predicated region
    $region26: #{critic_forward.1} parent=1 // pred_check
      _
    $region27: #{critic_forward.1} parent=1 // pred_check_branch
      %48 = sbr.rel (0) target = $region29
    $region28: #{critic_forward.1} parent=1 // pred_region
      _
    $region29: #{critic_forward.1} parent=1 // pred_fallthru
      _
    // Predicated region
    $region30: #{critic_forward.1} parent=1 // pred_check
      _
    $region31: #{critic_forward.1} parent=1 // pred_check_branch
      %50 = sbr.rel (0) target = $region33
    $region32: #{critic_forward.1} parent=1 // pred_region
      _
    $region33: #{critic_forward.1} parent=1 // pred_fallthru
      _
    // Predicated region
    $region34: #{critic_forward.1} parent=1 // pred_check
      _
    $region35: #{critic_forward.1} parent=1 // pred_check_branch
      %52 = sbr.rel (0) target = $region37
    $region36: #{critic_forward.1} parent=1 // pred_region
      _
    $region37: #{critic_forward.1} parent=1 // pred_fallthru
      _
    // Predicated region
    $region38: #{critic_forward.1} parent=1 // pred_check
      _
    $region39: #{critic_forward.1} parent=1 // pred_check_branch
      %54 = sbr.rel (0) target = $region41
    $region40: #{critic_forward.1} parent=1 // pred_region
      _
    $region41: #{critic_forward.1} parent=1 // pred_fallthru
      _
    // Predicated region
    $region42: #{critic_forward.1} parent=1 // pred_check
      _
    $region43: #{critic_forward.1} parent=1 // pred_check_branch
      %56 = sbr.rel (0) target = $region45
    $region44: #{critic_forward.1} parent=1 // pred_region
      _
    $region45: #{critic_forward.1} parent=1 // pred_fallthru
      _
    // Predicated region
    $region46: #{critic_forward.1} parent=1 // pred_check
      _
    $region47: #{critic_forward.1} parent=1 // pred_check_branch
      %58 = sbr.rel (0) target = $region49
    $region48: #{critic_forward.1} parent=1 // pred_region
      _
    $region49: #{critic_forward.1} parent=1 // pred_fallthru
      _
    // Predicated region
    $region50: #{critic_forward.1} parent=1 // pred_check
      _
    $region51: #{critic_forward.1} parent=1 // pred_check_branch
      %60 = sbr.rel (0) target = $region53
    $region52: #{critic_forward.1} parent=1 // pred_region
      _
    $region53: #{critic_forward.1} parent=1 // pred_fallthru
      _
    // Predicated region
    $region54: #{critic_forward.1} parent=1 // pred_check
      _
    $region55: #{critic_forward.1} parent=1 // pred_check_branch
      %62 = sbr.rel (0) target = $region57
    $region56: #{critic_forward.1} parent=1 // pred_region
      %63 = dma.done [#allocation5], 768
    $region57: #{critic_forward.1} parent=1 // pred_fallthru
      _
    %v65 = vld [vmem:[%s0] sm:$0xff]
    %v66 = vpack.c.bf16 %v65, %v65
    %v67 = vld [vmem:[%s1] sm:$0xff]
    %v68 = vpack.c.bf16 %v67, %v67
    %v69 = vld [vmem:[#allocation4] sm:$0xff]
    %v70 = vld [vmem:[#allocation4 + $0x8] sm:$0xff]
    %v71 = vld [vmem:[#allocation4 + $0x10] sm:$0xff]
    %v72 = vld [vmem:[#allocation4 + $0x18] sm:$0xff]
    %v73 = vld [vmem:[#allocation4 + $0x20] sm:$0xff]
    %v74 = vld [vmem:[#allocation4 + $0x28] sm:$0xff]
    %v75 = vld [vmem:[%s3] sm:$0xf]
    %v78 = vunpack.c.l.s4 1966171168
    %v79 = vunpack.c.0.s8 %v78
    %v80 = vlaneseq
    %v81 = vshrl.u32 %v80, 7
    %v82 = vsub.s32 %v79, %v81
    %v83 = vrot.slane %v75, %v82
    %v84 = vcombine.high %v83, %v83
    %v86 = vunpack.c.l.s4 1966171168
    %v87 = vunpack.c.0.s8 %v86
    %v88 = vlaneseq
    %v89 = vshrl.u32 %v88, 7
    %v90 = vsub.s32 %v87, %v89
    %v91 = vrot.slane %v83, %v90
    %v93 = vunpack.c.l.s4 1966171168
    %v94 = vunpack.c.0.s8 %v93
    %v95 = vlaneseq
    %v96 = vshrl.u32 %v95, 7
    %v97 = vsub.s32 %v94, %v96
    %v98 = vrot.slane %v84, %v97
    %v99 = vcombine.high %v91, %v91
    %v100 = vcombine.high %v98, %v98
    %vm101 = vcmask 15360
    %v103 = vsel %vm101, %v68, 0
    %vm105 = vcmask 1040384
    %v107 = vsel %vm105, %v91, 0
    %v110 = vsel %vm105, %v98, 0
    %v113 = vsel %vm105, %v99, 0
    %v116 = vsel %vm105, %v100, 0
    %118 = vmatprep.subr.bf16.mxu0 %v110
    %119 = vmatpush1.bf16.msra.mxu0 %v107
    %120 = vmatprep.subr.bf16.mxu0 0
    %121 = vmatpush1.bf16.msra.mxu0 0
    %122 = vmatprep.subr.bf16.mxu0 0
    %123 = vmatpush1.bf16.msra.mxu0 0
    %124 = vmatprep.subr.bf16.mxu0 0
    %125 = vmatpush1.bf16.msra.mxu0 0
    %126 = vmatprep.subr.bf16.mxu0 0
    %127 = vmatpush1.bf16.msra.mxu0 0
    %128 = vmatprep.subr.bf16.mxu0 0
    %129 = vmatpush1.bf16.msra.mxu0 0
    %130 = vmatprep.subr.bf16.mxu0 0
    %131 = vmatpush1.bf16.msra.mxu0 0
    %132 = vmatprep.subr.bf16.mxu0 0
    %133 = vmatpush1.bf16.msra.mxu0 0
    %134 = vmatprep.subr.bf16.mxu0 0
    %135 = vmatpush1.bf16.msra.mxu0 0
    %136 = vmatprep.subr.bf16.mxu0 0
    %137 = vmatpush1.bf16.msra.mxu0 0
    %138 = vmatprep.subr.bf16.mxu0 0
    %139 = vmatpush1.bf16.msra.mxu0 0
    %140 = vmatprep.subr.bf16.mxu0 0
    %141 = vmatpush1.bf16.msra.mxu0 0
    %142 = vmatprep.subr.bf16.mxu0 0
    %143 = vmatpush1.bf16.msra.mxu0 0
    %144 = vmatprep.subr.bf16.mxu0 0
    %145 = vmatpush1.bf16.msra.mxu0 0
    %146 = vmatprep.subr.bf16.mxu0 0
    %147 = vmatpush1.bf16.msra.mxu0 0
    %148 = vmatprep.subr.bf16.mxu0 0
    %149 = vmatpush1.bf16.msra.mxu0 0
    %150 = vmatprep.mubr.bf16.mxu0 0
    %151 = vmatmul.mubr.bf16.gmra.mrb[0].mxu0 %v103
    %v152 = vpop.f32.mrb[0].mxu0
    %v153 = vadd.f32 0.0, %v152
    %v154 = vpop.f32.mrb[0].mxu0
    %v155 = vadd.f32 0.0, %v154
    %v156 = vpop.f32.mrb[0].mxu0
    %v157 = vpop.f32.mrb[0].mxu0
    %158 = vdwg.mxu0
    %159 = vmatprep.subr.bf16.mxu0 %v116
    %160 = vmatpush1.bf16.msra.mxu0 %v113
    %161 = vmatprep.subr.bf16.mxu0 0
    %162 = vmatpush1.bf16.msra.mxu0 0
    %163 = vmatprep.subr.bf16.mxu0 0
    %164 = vmatpush1.bf16.msra.mxu0 0
    %165 = vmatprep.subr.bf16.mxu0 0
    %166 = vmatpush1.bf16.msra.mxu0 0
    %167 = vmatprep.subr.bf16.mxu0 0
    %168 = vmatpush1.bf16.msra.mxu0 0
    %169 = vmatprep.subr.bf16.mxu0 0
    %170 = vmatpush1.bf16.msra.mxu0 0
    %171 = vmatprep.subr.bf16.mxu0 0
    %172 = vmatpush1.bf16.msra.mxu0 0
    %173 = vmatprep.subr.bf16.mxu0 0
    %174 = vmatpush1.bf16.msra.mxu0 0
    %175 = vmatprep.subr.bf16.mxu0 0
    %176 = vmatpush1.bf16.msra.mxu0 0
    %177 = vmatprep.subr.bf16.mxu0 0
    %178 = vmatpush1.bf16.msra.mxu0 0
    %179 = vmatprep.subr.bf16.mxu0 0
    %180 = vmatpush1.bf16.msra.mxu0 0
    %181 = vmatprep.subr.bf16.mxu0 0
    %182 = vmatpush1.bf16.msra.mxu0 0
    %183 = vmatprep.subr.bf16.mxu0 0
    %184 = vmatpush1.bf16.msra.mxu0 0
    %185 = vmatprep.subr.bf16.mxu0 0
    %186 = vmatpush1.bf16.msra.mxu0 0
    %187 = vmatprep.subr.bf16.mxu0 0
    %188 = vmatpush1.bf16.msra.mxu0 0
    %189 = vmatprep.subr.bf16.mxu0 0
    %190 = vmatpush1.bf16.msra.mxu0 0
    %191 = vmatprep.mubr.bf16.mxu0 0
    %192 = vmatmul.mubr.bf16.gmra.mrb[0].mxu0 %v103
    %v193 = vpop.f32.mrb[0].mxu0
    %v194 = vadd.f32 0.0, %v193
    %v195 = vpop.f32.mrb[0].mxu0
    %v196 = vadd.f32 0.0, %v195
    %v197 = vpop.f32.mrb[0].mxu0
    %v198 = vpop.f32.mrb[0].mxu0
    %199 = vdwg.mxu0
    %v206 = vunpack.c.l.b16 %v69
    %v207 = vunpack.c.h.b16 %v69
    %v208 = vunpack.c.l.b16 %v70
    %v209 = vunpack.c.h.b16 %v70
    %v210 = vunpack.c.l.b16 %v71
    %v211 = vunpack.c.h.b16 %v71
    %v212 = vunpack.c.l.b16 %v72
    %v213 = vunpack.c.h.b16 %v72
    %v214 = vunpack.c.l.b16 %v73
    %v215 = vunpack.c.h.b16 %v73
    %v216 = vunpack.c.l.b16 %v74
    %v217 = vunpack.c.h.b16 %v74
    %v218 = vpack.c.b16 %v210, %v206
    %v219 = vpack.c.b16 %v211, %v207
    %v220 = vpack.c.b16 %v212, %v208
    %v221 = vpack.c.b16 %v213, %v209
    %v222 = vpack.c.b16 %v214, %v214
    %v223 = vpack.c.b16 %v215, %v215
    %v224 = vpack.c.b16 %v216, %v216
    %v225 = vpack.c.b16 %v217, %v217
    %vm230 = vcmask 195584
    %v232 = vsel %vm230, %v66, 0
    %vm234 = vcmask 1043456
    %v236 = vsel %vm234, %v222, 0
    %v239 = vsel %vm234, %v223, 0
    %v242 = vsel %vm234, %v224, 0
    %v245 = vsel %vm234, %v225, 0
    %247 = vmatprep.subr.bf16.mxu0 %v219
    %248 = vmatpush1.bf16.msra.mxu0 %v218
    %249 = vmatprep.subr.bf16.mxu0 %v239
    %250 = vmatpush1.bf16.msra.mxu0 %v236
    %251 = vmatprep.subr.bf16.mxu0 0
    %252 = vmatpush1.bf16.msra.mxu0 0
    %253 = vmatprep.subr.bf16.mxu0 0
    %254 = vmatpush1.bf16.msra.mxu0 0
    %255 = vmatprep.subr.bf16.mxu0 0
    %256 = vmatpush1.bf16.msra.mxu0 0
    %257 = vmatprep.subr.bf16.mxu0 0
    %258 = vmatpush1.bf16.msra.mxu0 0
    %259 = vmatprep.subr.bf16.mxu0 0
    %260 = vmatpush1.bf16.msra.mxu0 0
    %261 = vmatprep.subr.bf16.mxu0 0
    %262 = vmatpush1.bf16.msra.mxu0 0
    %263 = vmatprep.subr.bf16.mxu0 0
    %264 = vmatpush1.bf16.msra.mxu0 0
    %265 = vmatprep.subr.bf16.mxu0 0
    %266 = vmatpush1.bf16.msra.mxu0 0
    %267 = vmatprep.subr.bf16.mxu0 0
    %268 = vmatpush1.bf16.msra.mxu0 0
    %269 = vmatprep.subr.bf16.mxu0 0
    %270 = vmatpush1.bf16.msra.mxu0 0
    %271 = vmatprep.subr.bf16.mxu0 0
    %272 = vmatpush1.bf16.msra.mxu0 0
    %273 = vmatprep.subr.bf16.mxu0 0
    %274 = vmatpush1.bf16.msra.mxu0 0
    %275 = vmatprep.subr.bf16.mxu0 0
    %276 = vmatpush1.bf16.msra.mxu0 0
    %277 = vmatprep.subr.bf16.mxu0 0
    %278 = vmatpush1.bf16.msra.mxu0 0
    %279 = vmatprep.mubr.bf16.mxu0 0
    %280 = vmatmul.mubr.bf16.gmra.mrb[0].mxu0 %v232
    %v281 = vpop.f32.mrb[0].mxu0
    %v282 = vadd.f32 %v153, %v281
    %v283 = vpop.f32.mrb[0].mxu0
    %v284 = vadd.f32 %v155, %v283
    %v285 = vpop.f32.mrb[0].mxu0
    %v286 = vpop.f32.mrb[0].mxu0
    %287 = vdwg.mxu0
    %288 = vmatprep.subr.bf16.mxu0 %v221
    %289 = vmatpush1.bf16.msra.mxu0 %v220
    %290 = vmatprep.subr.bf16.mxu0 %v245
    %291 = vmatpush1.bf16.msra.mxu0 %v242
    %292 = vmatprep.subr.bf16.mxu0 0
    %293 = vmatpush1.bf16.msra.mxu0 0
    %294 = vmatprep.subr.bf16.mxu0 0
    %295 = vmatpush1.bf16.msra.mxu0 0
    %296 = vmatprep.subr.bf16.mxu0 0
    %297 = vmatpush1.bf16.msra.mxu0 0
    %298 = vmatprep.subr.bf16.mxu0 0
    %299 = vmatpush1.bf16.msra.mxu0 0
    %300 = vmatprep.subr.bf16.mxu0 0
    %301 = vmatpush1.bf16.msra.mxu0 0
    %302 = vmatprep.subr.bf16.mxu0 0
    %303 = vmatpush1.bf16.msra.mxu0 0
    %304 = vmatprep.subr.bf16.mxu0 0
    %305 = vmatpush1.bf16.msra.mxu0 0
    %306 = vmatprep.subr.bf16.mxu0 0
    %307 = vmatpush1.bf16.msra.mxu0 0
    %308 = vmatprep.subr.bf16.mxu0 0
    %309 = vmatpush1.bf16.msra.mxu0 0
    %310 = vmatprep.subr.bf16.mxu0 0
    %311 = vmatpush1.bf16.msra.mxu0 0
    %312 = vmatprep.subr.bf16.mxu0 0
    %313 = vmatpush1.bf16.msra.mxu0 0
    %314 = vmatprep.subr.bf16.mxu0 0
    %315 = vmatpush1.bf16.msra.mxu0 0
    %316 = vmatprep.subr.bf16.mxu0 0
    %317 = vmatpush1.bf16.msra.mxu0 0
    %318 = vmatprep.subr.bf16.mxu0 0
    %319 = vmatpush1.bf16.msra.mxu0 0
    %320 = vmatprep.mubr.bf16.mxu0 0
    %321 = vmatmul.mubr.bf16.gmra.mrb[0].mxu0 %v232
    %v322 = vpop.f32.mrb[0].mxu0
    %v323 = vadd.f32 %v194, %v322
    %v324 = vpop.f32.mrb[0].mxu0
    %v325 = vadd.f32 %v196, %v324
    %v326 = vpop.f32.mrb[0].mxu0
    %v327 = vpop.f32.mrb[0].mxu0
    %328 = vdwg.mxu0
    %v329 = vld [vmem:[%s4] sm:$0xf]
    %v331 = vlaneseq
    %v332 = vshrl.u32 %v331, 7
    %v333 = vsub.s32 0, %v332
    %v334 = vrot.slane %v329, %v333
    %v335 = vlaneseq
    %v336 = vshrl.u32 %v335, 7
    %v337 = vsub.s32 1, %v336
    %v338 = vrot.slane %v329, %v337
    %v339 = vlaneseq
    %v340 = vshrl.u32 %v339, 7
    %v341 = vsub.s32 2, %v340
    %v342 = vrot.slane %v329, %v341
    %v343 = vlaneseq
    %v344 = vshrl.u32 %v343, 7
    %v345 = vsub.s32 3, %v344
    %v346 = vrot.slane %v329, %v345
    %v351 = vadd.f32 %v282, %v334
    %v352 = vadd.f32 %v284, %v338
    %v353 = vadd.f32 %v323, %v342
    %v354 = vadd.f32 %v325, %v346
    %v355 = vmax.f32 %v351, 0.0
    %v356 = vmax.f32 %v352, 0.0
    %v357 = vmax.f32 %v353, 0.0
    %v358 = vmax.f32 %v354, 0.0
    %v359 = vpack.c.bf16 %v355, %v355
    %v360 = vpack.c.bf16 %v356, %v356
    %v361 = vpack.c.bf16 %v357, %v357
    %v362 = vpack.c.bf16 %v358, %v358
    %v363 = vld [vmem:[%s5] sm:$0xff]
    %v364 = vld [vmem:[%s5 + $0x8] sm:$0xff]
    %v365 = vld [vmem:[%s5 + $0x10] sm:$0xff]
    %v366 = vld [vmem:[%s5 + $0x18] sm:$0xff]
    %v367 = vld [vmem:[%s5 + $0x20] sm:$0xff]
    %v368 = vld [vmem:[%s5 + $0x28] sm:$0xff]
    %v369 = vld [vmem:[%s5 + $0x30] sm:$0xff]
    %v370 = vld [vmem:[%s5 + $0x38] sm:$0xff]
    %v371 = vld [vmem:[%s5 + $0x40] sm:$0xff]
    %v372 = vld [vmem:[%s5 + $0x48] sm:$0xff]
    %v373 = vld [vmem:[%s5 + $0x50] sm:$0xff]
    %v374 = vld [vmem:[%s5 + $0x58] sm:$0xff]
    %v375 = vld [vmem:[%s5 + $0x60] sm:$0xff]
    %v376 = vld [vmem:[%s5 + $0x68] sm:$0xff]
    %v377 = vld [vmem:[%s5 + $0x70] sm:$0xff]
    %v378 = vld [vmem:[%s5 + $0x78] sm:$0xff]
    %v379 = vld [vmem:[%s5 + $0x80] sm:$0xff]
    %v380 = vld [vmem:[%s5 + $0x88] sm:$0xff]
    %v381 = vld [vmem:[%s5 + $0x90] sm:$0xff]
    %v382 = vld [vmem:[%s5 + $0x98] sm:$0xff]
    %v383 = vld [vmem:[%s5 + $0xa0] sm:$0xff]
    %v384 = vld [vmem:[%s5 + $0xa8] sm:$0xff]
    %v385 = vld [vmem:[%s5 + $0xb0] sm:$0xff]
    %v386 = vld [vmem:[%s5 + $0xb8] sm:$0xff]
    %v387 = vld [vmem:[%s5 + $0xc0] sm:$0xff]
    %v388 = vld [vmem:[%s5 + $0xc8] sm:$0xff]
    %v389 = vld [vmem:[%s5 + $0xd0] sm:$0xff]
    %v390 = vld [vmem:[%s5 + $0xd8] sm:$0xff]
    %v391 = vld [vmem:[%s5 + $0xe0] sm:$0xff]
    %v392 = vld [vmem:[%s5 + $0xe8] sm:$0xff]
    %v393 = vld [vmem:[%s5 + $0xf0] sm:$0xff]
    %v394 = vld [vmem:[%s5 + $0xf8] sm:$0xff]
    %v395 = vld [vmem:[%s6] sm:$0x3]
    %v397 = vlaneseq
    %v398 = vshrl.u32 %v397, 7
    %v399 = vsub.s32 0, %v398
    %v400 = vrot.slane %v395, %v399
    %v401 = vlaneseq
    %v402 = vshrl.u32 %v401, 7
    %v403 = vsub.s32 1, %v402
    %v404 = vrot.slane %v395, %v403
    %v439 = vunpack.c.l.b16 %v363
    %v440 = vunpack.c.h.b16 %v363
    %v441 = vunpack.c.l.b16 %v364
    %v442 = vunpack.c.h.b16 %v364
    %v443 = vunpack.c.l.b16 %v365
    %v444 = vunpack.c.h.b16 %v365
    %v445 = vunpack.c.l.b16 %v366
    %v446 = vunpack.c.h.b16 %v366
    %v447 = vunpack.c.l.b16 %v367
    %v448 = vunpack.c.h.b16 %v367
    %v449 = vunpack.c.l.b16 %v368
    %v450 = vunpack.c.h.b16 %v368
    %v451 = vunpack.c.l.b16 %v369
    %v452 = vunpack.c.h.b16 %v369
    %v453 = vunpack.c.l.b16 %v370
    %v454 = vunpack.c.h.b16 %v370
    %v455 = vunpack.c.l.b16 %v371
    %v456 = vunpack.c.h.b16 %v371
    %v457 = vunpack.c.l.b16 %v372
    %v458 = vunpack.c.h.b16 %v372
    %v459 = vunpack.c.l.b16 %v373
    %v460 = vunpack.c.h.b16 %v373
    %v461 = vunpack.c.l.b16 %v374
    %v462 = vunpack.c.h.b16 %v374
    %v463 = vunpack.c.l.b16 %v375
    %v464 = vunpack.c.h.b16 %v375
    %v465 = vunpack.c.l.b16 %v376
    %v466 = vunpack.c.h.b16 %v376
    %v467 = vunpack.c.l.b16 %v377
    %v468 = vunpack.c.h.b16 %v377
    %v469 = vunpack.c.l.b16 %v378
    %v470 = vunpack.c.h.b16 %v378
    %v471 = vunpack.c.l.b16 %v379
    %v472 = vunpack.c.h.b16 %v379
    %v473 = vunpack.c.l.b16 %v380
    %v474 = vunpack.c.h.b16 %v380
    %v475 = vunpack.c.l.b16 %v381
    %v476 = vunpack.c.h.b16 %v381
    %v477 = vunpack.c.l.b16 %v382
    %v478 = vunpack.c.h.b16 %v382
    %v479 = vunpack.c.l.b16 %v383
    %v480 = vunpack.c.h.b16 %v383
    %v481 = vunpack.c.l.b16 %v384
    %v482 = vunpack.c.h.b16 %v384
    %v483 = vunpack.c.l.b16 %v385
    %v484 = vunpack.c.h.b16 %v385
    %v485 = vunpack.c.l.b16 %v386
    %v486 = vunpack.c.h.b16 %v386
    %v487 = vunpack.c.l.b16 %v387
    %v488 = vunpack.c.h.b16 %v387
    %v489 = vunpack.c.l.b16 %v388
    %v490 = vunpack.c.h.b16 %v388
    %v491 = vunpack.c.l.b16 %v389
    %v492 = vunpack.c.h.b16 %v389
    %v493 = vunpack.c.l.b16 %v390
    %v494 = vunpack.c.h.b16 %v390
    %v495 = vunpack.c.l.b16 %v391
    %v496 = vunpack.c.h.b16 %v391
    %v497 = vunpack.c.l.b16 %v392
    %v498 = vunpack.c.h.b16 %v392
    %v499 = vunpack.c.l.b16 %v393
    %v500 = vunpack.c.h.b16 %v393
    %v501 = vunpack.c.l.b16 %v394
    %v502 = vunpack.c.h.b16 %v394
    %v503 = vpack.c.b16 %v441, %v439
    %v504 = vpack.c.b16 %v442, %v440
    %v505 = vpack.c.b16 %v445, %v443
    %v506 = vpack.c.b16 %v446, %v444
    %v507 = vpack.c.b16 %v449, %v447
    %v508 = vpack.c.b16 %v450, %v448
    %v509 = vpack.c.b16 %v453, %v451
    %v510 = vpack.c.b16 %v454, %v452
    %v511 = vpack.c.b16 %v457, %v455
    %v512 = vpack.c.b16 %v458, %v456
    %v513 = vpack.c.b16 %v461, %v459
    %v514 = vpack.c.b16 %v462, %v460
    %v515 = vpack.c.b16 %v465, %v463
    %v516 = vpack.c.b16 %v466, %v464
    %v517 = vpack.c.b16 %v469, %v467
    %v518 = vpack.c.b16 %v470, %v468
    %v519 = vpack.c.b16 %v473, %v471
    %v520 = vpack.c.b16 %v474, %v472
    %v521 = vpack.c.b16 %v477, %v475
    %v522 = vpack.c.b16 %v478, %v476
    %v523 = vpack.c.b16 %v481, %v479
    %v524 = vpack.c.b16 %v482, %v480
    %v525 = vpack.c.b16 %v485, %v483
    %v526 = vpack.c.b16 %v486, %v484
    %v527 = vpack.c.b16 %v489, %v487
    %v528 = vpack.c.b16 %v490, %v488
    %v529 = vpack.c.b16 %v493, %v491
    %v530 = vpack.c.b16 %v494, %v492
    %v531 = vpack.c.b16 %v497, %v495
    %v532 = vpack.c.b16 %v498, %v496
    %v533 = vpack.c.b16 %v501, %v499
    %v534 = vpack.c.b16 %v502, %v500
    %567 = vmatprep.subr.bf16.mxu0 %v504
    %568 = vmatpush1.bf16.msra.mxu0 %v503
    %569 = vmatprep.subr.bf16.mxu0 %v506
    %570 = vmatpush1.bf16.msra.mxu0 %v505
    %571 = vmatprep.subr.bf16.mxu0 %v508
    %572 = vmatpush1.bf16.msra.mxu0 %v507
    %573 = vmatprep.subr.bf16.mxu0 %v510
    %574 = vmatpush1.bf16.msra.mxu0 %v509
    %575 = vmatprep.subr.bf16.mxu0 %v512
    %576 = vmatpush1.bf16.msra.mxu0 %v511
    %577 = vmatprep.subr.bf16.mxu0 %v514
    %578 = vmatpush1.bf16.msra.mxu0 %v513
    %579 = vmatprep.subr.bf16.mxu0 %v516
    %580 = vmatpush1.bf16.msra.mxu0 %v515
    %581 = vmatprep.subr.bf16.mxu0 %v518
    %582 = vmatpush1.bf16.msra.mxu0 %v517
    %583 = vmatprep.subr.bf16.mxu0 %v520
    %584 = vmatpush1.bf16.msra.mxu0 %v519
    %585 = vmatprep.subr.bf16.mxu0 %v522
    %586 = vmatpush1.bf16.msra.mxu0 %v521
    %587 = vmatprep.subr.bf16.mxu0 %v524
    %588 = vmatpush1.bf16.msra.mxu0 %v523
    %589 = vmatprep.subr.bf16.mxu0 %v526
    %590 = vmatpush1.bf16.msra.mxu0 %v525
    %591 = vmatprep.subr.bf16.mxu0 %v528
    %592 = vmatpush1.bf16.msra.mxu0 %v527
    %593 = vmatprep.subr.bf16.mxu0 %v530
    %594 = vmatpush1.bf16.msra.mxu0 %v529
    %595 = vmatprep.subr.bf16.mxu0 %v532
    %596 = vmatpush1.bf16.msra.mxu0 %v531
    %597 = vmatprep.subr.bf16.mxu0 %v534
    %598 = vmatpush1.bf16.msra.mxu0 %v533
    %599 = vmatprep.mubr.bf16.mxu0 %v360
    %600 = vmatmul.mubr.bf16.gmra.mrb[0].mxu0 %v359
    %v601 = vpop.f32.mrb[0].mxu0
    %v602 = vadd.f32 %v400, %v601
    %v603 = vpop.f32.mrb[0].mxu0
    %v604 = vadd.f32 %v404, %v603
    %v605 = vpop.f32.mrb[0].mxu0
    %v606 = vpop.f32.mrb[0].mxu0
    %607 = vdwg.mxu0
    %v608 = vmax.f32 %v602, 0.0
    %v609 = vmax.f32 %v604, 0.0
    %v610 = vld [vmem:[%s7] sm:$0xff]
    %v611 = vld [vmem:[%s7 + $0x8] sm:$0xff]
    %v612 = vld [vmem:[%s7 + $0x10] sm:$0xff]
    %v613 = vld [vmem:[%s7 + $0x18] sm:$0xff]
    %v614 = vld [vmem:[%s7 + $0x20] sm:$0xff]
    %v615 = vld [vmem:[%s7 + $0x28] sm:$0xff]
    %v616 = vld [vmem:[%s7 + $0x30] sm:$0xff]
    %v617 = vld [vmem:[%s7 + $0x38] sm:$0xff]
    %v618 = vld [vmem:[%s7 + $0x40] sm:$0xff]
    %v619 = vld [vmem:[%s7 + $0x48] sm:$0xff]
    %v620 = vld [vmem:[%s7 + $0x50] sm:$0xff]
    %v621 = vld [vmem:[%s7 + $0x58] sm:$0xff]
    %v622 = vld [vmem:[%s7 + $0x60] sm:$0xff]
    %v623 = vld [vmem:[%s7 + $0x68] sm:$0xff]
    %v624 = vld [vmem:[%s7 + $0x70] sm:$0xff]
    %v625 = vld [vmem:[%s7 + $0x78] sm:$0xff]
    %v626 = vld [vmem:[%s7 + $0x80] sm:$0xff]
    %v627 = vld [vmem:[%s7 + $0x88] sm:$0xff]
    %v628 = vld [vmem:[%s7 + $0x90] sm:$0xff]
    %v629 = vld [vmem:[%s7 + $0x98] sm:$0xff]
    %v630 = vld [vmem:[%s7 + $0xa0] sm:$0xff]
    %v631 = vld [vmem:[%s7 + $0xa8] sm:$0xff]
    %v632 = vld [vmem:[%s7 + $0xb0] sm:$0xff]
    %v633 = vld [vmem:[%s7 + $0xb8] sm:$0xff]
    %v634 = vld [vmem:[%s7 + $0xc0] sm:$0xff]
    %v635 = vld [vmem:[%s7 + $0xc8] sm:$0xff]
    %v636 = vld [vmem:[%s7 + $0xd0] sm:$0xff]
    %v637 = vld [vmem:[%s7 + $0xd8] sm:$0xff]
    %v638 = vld [vmem:[%s7 + $0xe0] sm:$0xff]
    %v639 = vld [vmem:[%s7 + $0xe8] sm:$0xff]
    %v640 = vld [vmem:[%s7 + $0xf0] sm:$0xff]
    %v641 = vld [vmem:[%s7 + $0xf8] sm:$0xff]
    %v642 = vld [vmem:[%s8] sm:$0x3]
    %v644 = vlaneseq
    %v645 = vshrl.u32 %v644, 7
    %v646 = vsub.s32 0, %v645
    %v647 = vrot.slane %v642, %v646
    %v648 = vlaneseq
    %v649 = vshrl.u32 %v648, 7
    %v650 = vsub.s32 1, %v649
    %v651 = vrot.slane %v642, %v650
    %v686 = vunpack.c.l.b16 %v610
    %v687 = vunpack.c.h.b16 %v610
    %v688 = vunpack.c.l.b16 %v611
    %v689 = vunpack.c.h.b16 %v611
    %v690 = vunpack.c.l.b16 %v612
    %v691 = vunpack.c.h.b16 %v612
    %v692 = vunpack.c.l.b16 %v613
    %v693 = vunpack.c.h.b16 %v613
    %v694 = vunpack.c.l.b16 %v614
    %v695 = vunpack.c.h.b16 %v614
    %v696 = vunpack.c.l.b16 %v615
    %v697 = vunpack.c.h.b16 %v615
    %v698 = vunpack.c.l.b16 %v616
    %v699 = vunpack.c.h.b16 %v616
    %v700 = vunpack.c.l.b16 %v617
    %v701 = vunpack.c.h.b16 %v617
    %v702 = vunpack.c.l.b16 %v618
    %v703 = vunpack.c.h.b16 %v618
    %v704 = vunpack.c.l.b16 %v619
    %v705 = vunpack.c.h.b16 %v619
    %v706 = vunpack.c.l.b16 %v620
    %v707 = vunpack.c.h.b16 %v620
    %v708 = vunpack.c.l.b16 %v621
    %v709 = vunpack.c.h.b16 %v621
    %v710 = vunpack.c.l.b16 %v622
    %v711 = vunpack.c.h.b16 %v622
    %v712 = vunpack.c.l.b16 %v623
    %v713 = vunpack.c.h.b16 %v623
    %v714 = vunpack.c.l.b16 %v624
    %v715 = vunpack.c.h.b16 %v624
    %v716 = vunpack.c.l.b16 %v625
    %v717 = vunpack.c.h.b16 %v625
    %v718 = vunpack.c.l.b16 %v626
    %v719 = vunpack.c.h.b16 %v626
    %v720 = vunpack.c.l.b16 %v627
    %v721 = vunpack.c.h.b16 %v627
    %v722 = vunpack.c.l.b16 %v628
    %v723 = vunpack.c.h.b16 %v628
    %v724 = vunpack.c.l.b16 %v629
    %v725 = vunpack.c.h.b16 %v629
    %v726 = vunpack.c.l.b16 %v630
    %v727 = vunpack.c.h.b16 %v630
    %v728 = vunpack.c.l.b16 %v631
    %v729 = vunpack.c.h.b16 %v631
    %v730 = vunpack.c.l.b16 %v632
    %v731 = vunpack.c.h.b16 %v632
    %v732 = vunpack.c.l.b16 %v633
    %v733 = vunpack.c.h.b16 %v633
    %v734 = vunpack.c.l.b16 %v634
    %v735 = vunpack.c.h.b16 %v634
    %v736 = vunpack.c.l.b16 %v635
    %v737 = vunpack.c.h.b16 %v635
    %v738 = vunpack.c.l.b16 %v636
    %v739 = vunpack.c.h.b16 %v636
    %v740 = vunpack.c.l.b16 %v637
    %v741 = vunpack.c.h.b16 %v637
    %v742 = vunpack.c.l.b16 %v638
    %v743 = vunpack.c.h.b16 %v638
    %v744 = vunpack.c.l.b16 %v639
    %v745 = vunpack.c.h.b16 %v639
    %v746 = vunpack.c.l.b16 %v640
    %v747 = vunpack.c.h.b16 %v640
    %v748 = vunpack.c.l.b16 %v641
    %v749 = vunpack.c.h.b16 %v641
    %v750 = vpack.c.b16 %v688, %v686
    %v751 = vpack.c.b16 %v689, %v687
    %v752 = vpack.c.b16 %v692, %v690
    %v753 = vpack.c.b16 %v693, %v691
    %v754 = vpack.c.b16 %v696, %v694
    %v755 = vpack.c.b16 %v697, %v695
    %v756 = vpack.c.b16 %v700, %v698
    %v757 = vpack.c.b16 %v701, %v699
    %v758 = vpack.c.b16 %v704, %v702
    %v759 = vpack.c.b16 %v705, %v703
    %v760 = vpack.c.b16 %v708, %v706
    %v761 = vpack.c.b16 %v709, %v707
    %v762 = vpack.c.b16 %v712, %v710
    %v763 = vpack.c.b16 %v713, %v711
    %v764 = vpack.c.b16 %v716, %v714
    %v765 = vpack.c.b16 %v717, %v715
    %v766 = vpack.c.b16 %v720, %v718
    %v767 = vpack.c.b16 %v721, %v719
    %v768 = vpack.c.b16 %v724, %v722
    %v769 = vpack.c.b16 %v725, %v723
    %v770 = vpack.c.b16 %v728, %v726
    %v771 = vpack.c.b16 %v729, %v727
    %v772 = vpack.c.b16 %v732, %v730
    %v773 = vpack.c.b16 %v733, %v731
    %v774 = vpack.c.b16 %v736, %v734
    %v775 = vpack.c.b16 %v737, %v735
    %v776 = vpack.c.b16 %v740, %v738
    %v777 = vpack.c.b16 %v741, %v739
    %v778 = vpack.c.b16 %v744, %v742
    %v779 = vpack.c.b16 %v745, %v743
    %v780 = vpack.c.b16 %v748, %v746
    %v781 = vpack.c.b16 %v749, %v747
    %814 = vmatprep.subr.bf16.mxu0 %v751
    %815 = vmatpush1.bf16.msra.mxu0 %v750
    %816 = vmatprep.subr.bf16.mxu0 %v753
    %817 = vmatpush1.bf16.msra.mxu0 %v752
    %818 = vmatprep.subr.bf16.mxu0 %v755
    %819 = vmatpush1.bf16.msra.mxu0 %v754
    %820 = vmatprep.subr.bf16.mxu0 %v757
    %821 = vmatpush1.bf16.msra.mxu0 %v756
    %822 = vmatprep.subr.bf16.mxu0 %v759
    %823 = vmatpush1.bf16.msra.mxu0 %v758
    %824 = vmatprep.subr.bf16.mxu0 %v761
    %825 = vmatpush1.bf16.msra.mxu0 %v760
    %826 = vmatprep.subr.bf16.mxu0 %v763
    %827 = vmatpush1.bf16.msra.mxu0 %v762
    %828 = vmatprep.subr.bf16.mxu0 %v765
    %829 = vmatpush1.bf16.msra.mxu0 %v764
    %830 = vmatprep.subr.bf16.mxu0 %v767
    %831 = vmatpush1.bf16.msra.mxu0 %v766
    %832 = vmatprep.subr.bf16.mxu0 %v769
    %833 = vmatpush1.bf16.msra.mxu0 %v768
    %834 = vmatprep.subr.bf16.mxu0 %v771
    %835 = vmatpush1.bf16.msra.mxu0 %v770
    %836 = vmatprep.subr.bf16.mxu0 %v773
    %837 = vmatpush1.bf16.msra.mxu0 %v772
    %838 = vmatprep.subr.bf16.mxu0 %v775
    %839 = vmatpush1.bf16.msra.mxu0 %v774
    %840 = vmatprep.subr.bf16.mxu0 %v777
    %841 = vmatpush1.bf16.msra.mxu0 %v776
    %842 = vmatprep.subr.bf16.mxu0 %v779
    %843 = vmatpush1.bf16.msra.mxu0 %v778
    %844 = vmatprep.subr.bf16.mxu0 %v781
    %845 = vmatpush1.bf16.msra.mxu0 %v780
    %846 = vmatprep.mubr.bf16.mxu0 %v362
    %847 = vmatmul.mubr.bf16.gmra.mrb[0].mxu0 %v361
    %v848 = vpop.f32.mrb[0].mxu0
    %v849 = vadd.f32 %v647, %v848
    %v850 = vpop.f32.mrb[0].mxu0
    %v851 = vadd.f32 %v651, %v850
    %v852 = vpop.f32.mrb[0].mxu0
    %v853 = vpop.f32.mrb[0].mxu0
    %854 = vdwg.mxu0
    %v855 = vmax.f32 %v849, 0.0
    %v856 = vmax.f32 %v851, 0.0
    %v857 = vld [vmem:[%s9] sm:$0xff]
    %v858 = vld [vmem:[%s9 + $0x8] sm:$0xff]
    %v859 = vld [vmem:[%s9 + $0x10] sm:$0xff]
    %v860 = vld [vmem:[%s9 + $0x18] sm:$0xff]
    %v861 = vld [vmem:[%s9 + $0x20] sm:$0xff]
    %v862 = vld [vmem:[%s9 + $0x28] sm:$0xff]
    %v863 = vld [vmem:[%s9 + $0x30] sm:$0xff]
    %v864 = vld [vmem:[%s9 + $0x38] sm:$0xff]
    %v865 = vld [vmem:[%s9 + $0x40] sm:$0xff]
    %v866 = vld [vmem:[%s9 + $0x48] sm:$0xff]
    %v867 = vld [vmem:[%s9 + $0x50] sm:$0xff]
    %v868 = vld [vmem:[%s9 + $0x58] sm:$0xff]
    %v869 = vld [vmem:[%s9 + $0x60] sm:$0xff]
    %v870 = vld [vmem:[%s9 + $0x68] sm:$0xff]
    %v871 = vld [vmem:[%s9 + $0x70] sm:$0xff]
    %v872 = vld [vmem:[%s9 + $0x78] sm:$0xff]
    %v873 = vld [vmem:[%s9 + $0x80] sm:$0xff]
    %v874 = vld [vmem:[%s9 + $0x88] sm:$0xff]
    %v875 = vld [vmem:[%s9 + $0x90] sm:$0xff]
    %v876 = vld [vmem:[%s9 + $0x98] sm:$0xff]
    %v877 = vld [vmem:[%s9 + $0xa0] sm:$0xff]
    %v878 = vld [vmem:[%s9 + $0xa8] sm:$0xff]
    %v879 = vld [vmem:[%s9 + $0xb0] sm:$0xff]
    %v880 = vld [vmem:[%s9 + $0xb8] sm:$0xff]
    %v881 = vld [vmem:[%s9 + $0xc0] sm:$0xff]
    %v882 = vld [vmem:[%s9 + $0xc8] sm:$0xff]
    %v883 = vld [vmem:[%s9 + $0xd0] sm:$0xff]
    %v884 = vld [vmem:[%s9 + $0xd8] sm:$0xff]
    %v885 = vld [vmem:[%s9 + $0xe0] sm:$0xff]
    %v886 = vld [vmem:[%s9 + $0xe8] sm:$0xff]
    %v887 = vld [vmem:[%s9 + $0xf0] sm:$0xff]
    %v888 = vld [vmem:[%s9 + $0xf8] sm:$0xff]
    %v889 = vld [vmem:[#allocation2] sm:$0x1]
    %v891 = vlaneseq
    %v892 = vshrl.u32 %v891, 7
    %v893 = vsub.s32 0, %v892
    %v894 = vrot.slane %v889, %v893
    %896 = vmatprep.subr.mxu0 0.0
    %897 = vmatpush1.msra.mxu0 %v857
    %898 = vmatprep.subr.mxu0 0.0
    %899 = vmatpush1.msra.mxu0 %v858
    %900 = vmatprep.subr.mxu0 0.0
    %901 = vmatpush1.msra.mxu0 %v859
    %902 = vmatprep.subr.mxu0 0.0
    %903 = vmatpush1.msra.mxu0 %v860
    %904 = vmatprep.subr.mxu0 0.0
    %905 = vmatpush1.msra.mxu0 %v861
    %906 = vmatprep.subr.mxu0 0.0
    %907 = vmatpush1.msra.mxu0 %v862
    %908 = vmatprep.subr.mxu0 0.0
    %909 = vmatpush1.msra.mxu0 %v863
    %910 = vmatprep.subr.mxu0 0.0
    %911 = vmatpush1.msra.mxu0 %v864
    %912 = vmatprep.subr.mxu0 0.0
    %913 = vmatpush1.msra.mxu0 %v865
    %914 = vmatprep.subr.mxu0 0.0
    %915 = vmatpush1.msra.mxu0 %v866
    %916 = vmatprep.subr.mxu0 0.0
    %917 = vmatpush1.msra.mxu0 %v867
    %918 = vmatprep.subr.mxu0 0.0
    %919 = vmatpush1.msra.mxu0 %v868
    %920 = vmatprep.subr.mxu0 0.0
    %921 = vmatpush1.msra.mxu0 %v869
    %922 = vmatprep.subr.mxu0 0.0
    %923 = vmatpush1.msra.mxu0 %v870
    %924 = vmatprep.subr.mxu0 0.0
    %925 = vmatpush1.msra.mxu0 %v871
    %926 = vmatprep.subr.mxu0 0.0
    %927 = vmatpush1.msra.mxu0 %v872
    %928 = vmatprep.subr.mxu0 0.0
    %929 = vmatpush1.msra.mxu0 %v873
    %930 = vmatprep.subr.mxu0 0.0
    %931 = vmatpush1.msra.mxu0 %v874
    %932 = vmatprep.subr.mxu0 0.0
    %933 = vmatpush1.msra.mxu0 %v875
    %934 = vmatprep.subr.mxu0 0.0
    %935 = vmatpush1.msra.mxu0 %v876
    %936 = vmatprep.subr.mxu0 0.0
    %937 = vmatpush1.msra.mxu0 %v877
    %938 = vmatprep.subr.mxu0 0.0
    %939 = vmatpush1.msra.mxu0 %v878
    %940 = vmatprep.subr.mxu0 0.0
    %941 = vmatpush1.msra.mxu0 %v879
    %942 = vmatprep.subr.mxu0 0.0
    %943 = vmatpush1.msra.mxu0 %v880
    %944 = vmatprep.subr.mxu0 0.0
    %945 = vmatpush1.msra.mxu0 %v881
    %946 = vmatprep.subr.mxu0 0.0
    %947 = vmatpush1.msra.mxu0 %v882
    %948 = vmatprep.subr.mxu0 0.0
    %949 = vmatpush1.msra.mxu0 %v883
    %950 = vmatprep.subr.mxu0 0.0
    %951 = vmatpush1.msra.mxu0 %v884
    %952 = vmatprep.subr.mxu0 0.0
    %953 = vmatpush1.msra.mxu0 %v885
    %954 = vmatprep.subr.mxu0 0.0
    %955 = vmatpush1.msra.mxu0 %v886
    %956 = vmatprep.subr.mxu0 0.0
    %957 = vmatpush1.msra.mxu0 %v887
    %958 = vmatprep.subr.mxu0 0.0
    %959 = vmatpush1.msra.mxu0 %v888
    %960 = vmatprep.mubr.f32.mxu0 %v609
    %961 = vmatmul.mubr.f32.gmra.mrb[0].mxu0 %v608
    %v962 = vpop.f32.mrb[0].mxu0
    %v963 = vadd.f32 %v894, %v962
    %v964 = vpop.f32.mrb[0].mxu0
    %965 = vdwg.mxu0
    %vm966 = vcmask 7168
    %967 = vst.msk [vmem:[%s13] sm:$0xff] %vm966, %v963
    %v968 = vld [vmem:[%s11] sm:$0xff]
    %v969 = vld [vmem:[%s11 + $0x8] sm:$0xff]
    %v970 = vld [vmem:[%s11 + $0x10] sm:$0xff]
    %v971 = vld [vmem:[%s11 + $0x18] sm:$0xff]
    %v972 = vld [vmem:[%s11 + $0x20] sm:$0xff]
    %v973 = vld [vmem:[%s11 + $0x28] sm:$0xff]
    %v974 = vld [vmem:[%s11 + $0x30] sm:$0xff]
    %v975 = vld [vmem:[%s11 + $0x38] sm:$0xff]
    %v976 = vld [vmem:[%s11 + $0x40] sm:$0xff]
    %v977 = vld [vmem:[%s11 + $0x48] sm:$0xff]
    %v978 = vld [vmem:[%s11 + $0x50] sm:$0xff]
    %v979 = vld [vmem:[%s11 + $0x58] sm:$0xff]
    %v980 = vld [vmem:[%s11 + $0x60] sm:$0xff]
    %v981 = vld [vmem:[%s11 + $0x68] sm:$0xff]
    %v982 = vld [vmem:[%s11 + $0x70] sm:$0xff]
    %v983 = vld [vmem:[%s11 + $0x78] sm:$0xff]
    %v984 = vld [vmem:[%s11 + $0x80] sm:$0xff]
    %v985 = vld [vmem:[%s11 + $0x88] sm:$0xff]
    %v986 = vld [vmem:[%s11 + $0x90] sm:$0xff]
    %v987 = vld [vmem:[%s11 + $0x98] sm:$0xff]
    %v988 = vld [vmem:[%s11 + $0xa0] sm:$0xff]
    %v989 = vld [vmem:[%s11 + $0xa8] sm:$0xff]
    %v990 = vld [vmem:[%s11 + $0xb0] sm:$0xff]
    %v991 = vld [vmem:[%s11 + $0xb8] sm:$0xff]
    %v992 = vld [vmem:[%s11 + $0xc0] sm:$0xff]
    %v993 = vld [vmem:[%s11 + $0xc8] sm:$0xff]
    %v994 = vld [vmem:[%s11 + $0xd0] sm:$0xff]
    %v995 = vld [vmem:[%s11 + $0xd8] sm:$0xff]
    %v996 = vld [vmem:[%s11 + $0xe0] sm:$0xff]
    %v997 = vld [vmem:[%s11 + $0xe8] sm:$0xff]
    %v998 = vld [vmem:[%s11 + $0xf0] sm:$0xff]
    %v999 = vld [vmem:[%s11 + $0xf8] sm:$0xff]
    %v1000 = vld [vmem:[#allocation3] sm:$0x1]
    %v1002 = vlaneseq
    %v1003 = vshrl.u32 %v1002, 7
    %v1004 = vsub.s32 0, %v1003
    %v1005 = vrot.slane %v1000, %v1004
    %1007 = vmatprep.subr.mxu0 0.0
    %1008 = vmatpush1.msra.mxu0 %v968
    %1009 = vmatprep.subr.mxu0 0.0
    %1010 = vmatpush1.msra.mxu0 %v969
    %1011 = vmatprep.subr.mxu0 0.0
    %1012 = vmatpush1.msra.mxu0 %v970
    %1013 = vmatprep.subr.mxu0 0.0
    %1014 = vmatpush1.msra.mxu0 %v971
    %1015 = vmatprep.subr.mxu0 0.0
    %1016 = vmatpush1.msra.mxu0 %v972
    %1017 = vmatprep.subr.mxu0 0.0
    %1018 = vmatpush1.msra.mxu0 %v973
    %1019 = vmatprep.subr.mxu0 0.0
    %1020 = vmatpush1.msra.mxu0 %v974
    %1021 = vmatprep.subr.mxu0 0.0
    %1022 = vmatpush1.msra.mxu0 %v975
    %1023 = vmatprep.subr.mxu0 0.0
    %1024 = vmatpush1.msra.mxu0 %v976
    %1025 = vmatprep.subr.mxu0 0.0
    %1026 = vmatpush1.msra.mxu0 %v977
    %1027 = vmatprep.subr.mxu0 0.0
    %1028 = vmatpush1.msra.mxu0 %v978
    %1029 = vmatprep.subr.mxu0 0.0
    %1030 = vmatpush1.msra.mxu0 %v979
    %1031 = vmatprep.subr.mxu0 0.0
    %1032 = vmatpush1.msra.mxu0 %v980
    %1033 = vmatprep.subr.mxu0 0.0
    %1034 = vmatpush1.msra.mxu0 %v981
    %1035 = vmatprep.subr.mxu0 0.0
    %1036 = vmatpush1.msra.mxu0 %v982
    %1037 = vmatprep.subr.mxu0 0.0
    %1038 = vmatpush1.msra.mxu0 %v983
    %1039 = vmatprep.subr.mxu0 0.0
    %1040 = vmatpush1.msra.mxu0 %v984
    %1041 = vmatprep.subr.mxu0 0.0
    %1042 = vmatpush1.msra.mxu0 %v985
    %1043 = vmatprep.subr.mxu0 0.0
    %1044 = vmatpush1.msra.mxu0 %v986
    %1045 = vmatprep.subr.mxu0 0.0
    %1046 = vmatpush1.msra.mxu0 %v987
    %1047 = vmatprep.subr.mxu0 0.0
    %1048 = vmatpush1.msra.mxu0 %v988
    %1049 = vmatprep.subr.mxu0 0.0
    %1050 = vmatpush1.msra.mxu0 %v989
    %1051 = vmatprep.subr.mxu0 0.0
    %1052 = vmatpush1.msra.mxu0 %v990
    %1053 = vmatprep.subr.mxu0 0.0
    %1054 = vmatpush1.msra.mxu0 %v991
    %1055 = vmatprep.subr.mxu0 0.0
    %1056 = vmatpush1.msra.mxu0 %v992
    %1057 = vmatprep.subr.mxu0 0.0
    %1058 = vmatpush1.msra.mxu0 %v993
    %1059 = vmatprep.subr.mxu0 0.0
    %1060 = vmatpush1.msra.mxu0 %v994
    %1061 = vmatprep.subr.mxu0 0.0
    %1062 = vmatpush1.msra.mxu0 %v995
    %1063 = vmatprep.subr.mxu0 0.0
    %1064 = vmatpush1.msra.mxu0 %v996
    %1065 = vmatprep.subr.mxu0 0.0
    %1066 = vmatpush1.msra.mxu0 %v997
    %1067 = vmatprep.subr.mxu0 0.0
    %1068 = vmatpush1.msra.mxu0 %v998
    %1069 = vmatprep.subr.mxu0 0.0
    %1070 = vmatpush1.msra.mxu0 %v999
    %1071 = vmatprep.mubr.f32.mxu0 %v856
    %1072 = vmatmul.mubr.f32.gmra.mrb[0].mxu0 %v855
    %v1073 = vpop.f32.mrb[0].mxu0
    %v1074 = vadd.f32 %v1005, %v1073
    %v1075 = vpop.f32.mrb[0].mxu0
    %1076 = vdwg.mxu0
    %1077 = vst.msk [vmem:[%s14] sm:$0xff] %vm966, %v1074
    // Predicated region
    $region58: #{critic_forward.1} parent=1 // pred_check
      _
    $region59: #{critic_forward.1} parent=1 // pred_check_branch
      %1079 = sbr.rel (0) target = $region61
    $region60: #{critic_forward.1} parent=1 // pred_region
      _
    $region61: #{critic_forward.1} parent=1 // pred_fallthru
      _
    // Predicated region
    $region62: #{critic_forward.1} parent=1 // pred_check
      _
    $region63: #{critic_forward.1} parent=1 // pred_check_branch
      %1081 = sbr.rel (0) target = $region65
    $region64: #{critic_forward.1} parent=1 // pred_region
      _
    $region65: #{critic_forward.1} parent=1 // pred_fallthru
      _
    // Predicated region
    $region66: #{critic_forward.1} parent=1 // pred_check
      _
    $region67: #{critic_forward.1} parent=1 // pred_check_branch
      %1083 = sbr.rel (0) target = $region69
    $region68: #{critic_forward.1} parent=1 // pred_region
      _
    $region69: #{critic_forward.1} parent=1 // pred_fallthru
      _
    // Predicated region
    $region70: #{critic_forward.1} parent=1 // pred_check
      _
    $region71: #{critic_forward.1} parent=1 // pred_check_branch
      %1085 = sbr.rel (0) target = $region73
    $region72: #{critic_forward.1} parent=1 // pred_region
      _
    $region73: #{critic_forward.1} parent=1 // pred_fallthru
      _
    %1086 = vsyncpa [#allocation5], 1

</llo_original>
